<compile_context>
chip_gen: v7x
topology: tpu7x:2x2x1
jax: 0.10.0
libtpu: 0.0.40
codegen_flags: <defaults>
</compile_context>

<pallas_src>
import functools
import math

import jax
import jax.numpy as jnp
from jax.experimental import pallas as pl
from jax.experimental.pallas import tpu as pltpu


def _rope_kernel(x_ref, cos_ref, sin_ref, o_ref, *, d: int, pass_through: bool):
    """x_ref/o_ref: (tS, W) with W == F (full-width path) or W == d (aliased path).
    cos_ref/sin_ref: (tS, d//2) in x.dtype (half-caches)."""
    d2 = d // 2
    cos = cos_ref[...].astype(jnp.float32)
    sin = sin_ref[...].astype(jnp.float32)

    # Read only the slices we need, straight from the ref (item 8).
    x1 = x_ref[:, :d2].astype(jnp.float32)
    x2 = x_ref[:, d2:d].astype(jnp.float32)

    # Reference semantics: rotated = [x1, x2]*cos_cached + [-x2, x1]*sin_cached,
    # with cos_cached/sin_cached being the half-cache duplicated along features.
    o_ref[:, :d2] = (x1 * cos - x2 * sin).astype(o_ref.dtype)
    o_ref[:, d2:d] = (x2 * cos + x1 * sin).astype(o_ref.dtype)

    if pass_through:
        # Full-width path only (d < F, non-lane-aligned d): plain vld -> vst stream.
        # TODO(synk): keep d (ideally d/2) a multiple of 128 in real models so these
        # splits land on lane boundaries and stores stay unmasked.
        o_ref[:, d:] = x_ref[:, d:]


def _choose_seq_tile(S: int, F: int, itemsize: int, target_bytes: int = 4 << 20) -> int:
    """Largest sequence tile that keeps one x tile <= ~4 MiB and respects the
    sublane multiple for the dtype. Never falls back to a full-S mega-tile; ragged
    sequences are handled by pl.cdiv in the grid (Pallas pads/masks the last block)."""
    sublane = {4: 8, 2: 16, 1: 32}.get(itemsize, 8)
    target_rows = max(sublane, target_bytes // max(1, F * itemsize))
    ts = (target_rows // sublane) * sublane
    s_padded = ((S + sublane - 1) // sublane) * sublane
    return max(sublane, min(ts, s_padded))


def rotary_positional_embedding(x: jax.Array, d: int, base: int = 10000) -> jax.Array:
    """Apply RoPE to the first `d` features of x (shape [..., tokens, features])."""
    *lead, S, F = x.shape
    assert d % 2 == 0 and 0 < d <= F
    d2 = d // 2

    # --- half cos/sin caches (plain-JAX glue, mirrors _build_cache) ---
    theta = 1.0 / (base ** (jnp.arange(0, d, 2, dtype=jnp.float32) / d))  # (d/2,)
    seq_idx = jnp.arange(S, dtype=jnp.float32)                            # (S,)
    idx_theta = seq_idx[:, None] * theta[None, :]                         # (S, d/2)
    cos_half = jnp.cos(idx_theta).astype(x.dtype)                         # (S, d/2), x dtype
    sin_half = jnp.sin(idx_theta).astype(x.dtype)                         # (S, d/2), x dtype

    B = math.prod(lead) if lead else 1
    x3 = x.reshape(B, S, F)

    itemsize = jnp.dtype(x.dtype).itemsize
    tS = _choose_seq_tile(S, F, itemsize)
    grid = (pl.cdiv(S, tS), B)  # batch innermost: cos/sin tiles not re-fetched per batch

    # Lane-aligned d < F: shrink blocks to width d and alias x into the output so the
    # pass-through columns [d:F] never move through VMEM (they stay in the aliased
    # HBM buffer untouched). Otherwise use full-width blocks + in-kernel pass-through.
    narrow = (d < F) and (d % 128 == 0)
    width = d if narrow else F
    pass_through = (not narrow) and (d < F)

    kernel = functools.partial(_rope_kernel, d=d, pass_through=pass_through)

    out = pl.pallas_call(
        kernel,
        out_shape=jax.ShapeDtypeStruct((B, S, F), x.dtype),
        grid_spec=pltpu.PrefetchScalarGridSpec(
            num_scalar_prefetch=0,
            grid=grid,
            in_specs=[
                pl.BlockSpec((pl.Squeezed(), tS, width), lambda s, b: (b, s, 0)),  # x tile
                pl.BlockSpec((tS, d2), lambda s, b: (s, 0)),                        # cos half
                pl.BlockSpec((tS, d2), lambda s, b: (s, 0)),                        # sin half
            ],
            out_specs=pl.BlockSpec((pl.Squeezed(), tS, width), lambda s, b: (b, s, 0)),
        ),
        input_output_aliases=({0: 0} if narrow else {}),
        compiler_params=pltpu.CompilerParams(
            dimension_semantics=("parallel", "parallel"),
            vmem_limit_bytes=48 * 1024 * 1024,
        ),
    )(x3, cos_half, sin_half)

    return out.reshape(*lead, S, F)


def _rope_reference(x: jax.Array, d: int, base: int = 10000) -> jax.Array:
    """Pure-JAX reference mirroring the PyTorch module exactly."""
    *_, S, F = x.shape
    theta = 1.0 / (base ** (jnp.arange(0, d, 2, dtype=jnp.float32) / d))
    seq_idx = jnp.arange(S, dtype=jnp.float32)
    idx_theta = jnp.einsum("n,d->nd", seq_idx, theta)
    idx_theta2 = jnp.concatenate([idx_theta, idx_theta], axis=1)
    cos_cached = jnp.cos(idx_theta2)
    sin_cached = jnp.sin(idx_theta2)

    s_rope, s_pass = x[..., :d], x[..., d:]
    d2 = d // 2
    neg_half = jnp.concatenate([-s_rope[..., d2:], s_rope[..., :d2]], axis=-1)
    s_rope = s_rope * cos_cached[:S] + neg_half * sin_cached[:S]
    return jnp.concatenate([s_rope, s_pass], axis=-1)


if __name__ == "__main__":
    root = jax.random.PRNGKey(0)
    k1, k2, k3 = jax.random.split(root, 3)

    # Case 1 (primary demo): rotate first 16 of 32 features -> full-width blocks
    # with in-kernel pass-through (d not lane-aligned).
    x1 = jax.random.normal(k1, (2, 8, 32), dtype=jnp.float32)
    f1 = jax.jit(functools.partial(rotary_positional_embedding, d=16))
    o1 = jax.block_until_ready(f1(x1))
    assert o1.shape == x1.shape
    assert jnp.allclose(o1, _rope_reference(x1, d=16), atol=1e-5, rtol=1e-5), "case1 mismatch"

    # Case 2: d == F (rotate everything) -> no pass-through columns at all.
    x2 = jax.random.normal(k2, (2, 8, 32), dtype=jnp.float32)
    f2 = jax.jit(functools.partial(rotary_positional_embedding, d=32))
    o2 = jax.block_until_ready(f2(x2))
    assert jnp.allclose(o2, _rope_reference(x2, d=32), atol=1e-5, rtol=1e-5), "case2 mismatch"

    # Case 3: lane-aligned d < F -> width-d blocks + input/output aliasing, the
    # pass-through columns never round-trip through VMEM.
    x3 = jax.random.normal(k3, (2, 16, 256), dtype=jnp.float32)
    f3 = jax.jit(functools.partial(rotary_positional_embedding, d=128))
    o3 = jax.block_until_ready(f3(x3))
    assert jnp.allclose(o3, _rope_reference(x3, d=128), atol=1e-5, rtol=1e-5), "case3 mismatch"

    print("KERNEL_OK")
</pallas_src>

<mosaic_0001>
module attributes {stable_mosaic.version = 11 : i64} {
  func.func @_rope_kernel(%arg0: i32, %arg1: i32, %arg2: memref<1x8x32xf32, #tpu.memory_space<vmem>>, %arg3: memref<8x8xf32, #tpu.memory_space<vmem>>, %arg4: memref<8x8xf32, #tpu.memory_space<vmem>>, %arg5: memref<1x8x32xf32, #tpu.memory_space<vmem>>) attributes {dimension_semantics = [#tpu.dimension_semantics<parallel>, #tpu.dimension_semantics<parallel>], iteration_bounds = array<i64: 1, 2>, scalar_prefetch = 0 : i64, scratch_operands = 0 : i64, tpu.core_type = #tpu.core_type<tc>, window_params = [{transform_indices = @transform_0, window_bounds = array<i64: 1, 8, 32>}, {transform_indices = @transform_1, window_bounds = array<i64: 8, 8>}, {transform_indices = @transform_2, window_bounds = array<i64: 8, 8>}, {transform_indices = @transform_3, window_bounds = array<i64: 1, 8, 32>}]} {
    %c0 = arith.constant 0 : index
    %c0_0 = arith.constant 0 : index
    %0 = vector.load %arg3[%c0, %c0_0] : memref<8x8xf32, #tpu.memory_space<vmem>>, vector<8x8xf32>
    %c0_1 = arith.constant 0 : index
    %c0_2 = arith.constant 0 : index
    %1 = vector.load %arg4[%c0_1, %c0_2] : memref<8x8xf32, #tpu.memory_space<vmem>>, vector<8x8xf32>
    %c0_3 = arith.constant 0 : index
    %c0_4 = arith.constant 0 : index
    %c0_5 = arith.constant 0 : index
    %2 = vector.load %arg2[%c0_3, %c0_4, %c0_5] : memref<1x8x32xf32, #tpu.memory_space<vmem>>, vector<1x8x8xf32>
    %3 = vector.shape_cast %2 : vector<1x8x8xf32> to vector<8x8xf32>
    %c0_6 = arith.constant 0 : index
    %c0_7 = arith.constant 0 : index
    %c8 = arith.constant 8 : index
    %4 = vector.load %arg2[%c0_6, %c0_7, %c8] : memref<1x8x32xf32, #tpu.memory_space<vmem>>, vector<1x8x8xf32>
    %5 = vector.shape_cast %4 : vector<1x8x8xf32> to vector<8x8xf32>
    %6 = arith.mulf %3, %0 : vector<8x8xf32>
    %7 = arith.mulf %5, %1 : vector<8x8xf32>
    %8 = arith.subf %6, %7 : vector<8x8xf32>
    %c0_8 = arith.constant 0 : index
    %c0_9 = arith.constant 0 : index
    %c0_10 = arith.constant 0 : index
    %9 = vector.load %arg5[%c0_8, %c0_9, %c0_10] : memref<1x8x32xf32, #tpu.memory_space<vmem>>, vector<1x8x8xf32>
    %10 = vector.shape_cast %9 : vector<1x8x8xf32> to vector<8x8xf32>
    %11 = vector.shape_cast %8 : vector<8x8xf32> to vector<1x8x8xf32>
    tpu.vector_store %arg5[%c0_8, %c0_9, %c0_10], %11 {strides = array<i32>} : memref<1x8x32xf32, #tpu.memory_space<vmem>>, vector<1x8x8xf32>,
    %12 = arith.mulf %5, %0 : vector<8x8xf32>
    %13 = arith.mulf %3, %1 : vector<8x8xf32>
    %14 = arith.addf %12, %13 : vector<8x8xf32>
    %c0_11 = arith.constant 0 : index
    %c0_12 = arith.constant 0 : index
    %c8_13 = arith.constant 8 : index
    %15 = vector.load %arg5[%c0_11, %c0_12, %c8_13] : memref<1x8x32xf32, #tpu.memory_space<vmem>>, vector<1x8x8xf32>
    %16 = vector.shape_cast %15 : vector<1x8x8xf32> to vector<8x8xf32>
    %17 = vector.shape_cast %14 : vector<8x8xf32> to vector<1x8x8xf32>
    tpu.vector_store %arg5[%c0_11, %c0_12, %c8_13], %17 {strides = array<i32>} : memref<1x8x32xf32, #tpu.memory_space<vmem>>, vector<1x8x8xf32>,
    %c0_14 = arith.constant 0 : index
    %c0_15 = arith.constant 0 : index
    %c16 = arith.constant 16 : index
    %18 = vector.load %arg2[%c0_14, %c0_15, %c16] : memref<1x8x32xf32, #tpu.memory_space<vmem>>, vector<1x8x16xf32>
    %19 = vector.shape_cast %18 : vector<1x8x16xf32> to vector<8x16xf32>
    %c0_16 = arith.constant 0 : index
    %c0_17 = arith.constant 0 : index
    %c16_18 = arith.constant 16 : index
    %20 = vector.load %arg5[%c0_16, %c0_17, %c16_18] : memref<1x8x32xf32, #tpu.memory_space<vmem>>, vector<1x8x16xf32>
    %21 = vector.shape_cast %20 : vector<1x8x16xf32> to vector<8x16xf32>
    %22 = vector.shape_cast %19 : vector<8x16xf32> to vector<1x8x16xf32>
    tpu.vector_store %arg5[%c0_16, %c0_17, %c16_18], %22 {strides = array<i32>} : memref<1x8x32xf32, #tpu.memory_space<vmem>>, vector<1x8x16xf32>,
    return
  }
  func.func @transform_0(%arg0: i32, %arg1: i32) -> (i32, i32, i32) {
    %c0_i32 = arith.constant 0 : i32
    %c0_i32_0 = arith.constant 0 : i32
    return %arg1, %arg0, %c0_i32 : i32, i32, i32
  }
  func.func @transform_1(%arg0: i32, %arg1: i32) -> (i32, i32) {
    %c0_i32 = arith.constant 0 : i32
    %c0_i32_0 = arith.constant 0 : i32
    return %arg0, %c0_i32 : i32, i32
  }
  func.func @transform_2(%arg0: i32, %arg1: i32) -> (i32, i32) {
    %c0_i32 = arith.constant 0 : i32
    %c0_i32_0 = arith.constant 0 : i32
    return %arg0, %c0_i32 : i32, i32
  }
  func.func @transform_3(%arg0: i32, %arg1: i32) -> (i32, i32, i32) {
    %c0_i32 = arith.constant 0 : i32
    %c0_i32_0 = arith.constant 0 : i32
    return %arg1, %arg0, %c0_i32 : i32, i32, i32
  }
}

</mosaic_0001>

<llo_original>
// kernel: rotary_positional_embedding.1
$region0: #{rotary_positional_embedding.1}
  #allocation0 [shape = 'u32[]', space=smem, size = 0x4, offset = 0x4, fixed_abs, tag = 'smem constant byte address 0x4 - core index']
  #allocation1 [shape = 'u32[144,128]{1,0:T(1,128)}', space=vmem, size = 0x12000, scoped, tag = 'internal scratch']
  %s0 = inlined_call_operand.vmem [shape: f32[2,8,32], index: 0, kind: input, shape index: {}]
  %s1 = inlined_call_operand.vmem [shape: f32[8,8], index: 1, kind: input, shape index: {}]
  %s2 = inlined_call_operand.vmem [shape: f32[8,8], index: 2, kind: input, shape index: {}]
  %s3 = inlined_call_operand.hbm [shape: f32[2,8,32], index: 3, kind: output, shape index: {}]
  %s4 = sld [smem:[#allocation0]]
  $region45: #{rotary_positional_embedding.1} parent=0
    _
  %s6 = ssub.s32 1, %s4
  %s7 = scalar_select 0, %s6, %s4
  $region1: #{rotary_positional_embedding.1} parent=0
    #allocation2 [shape = 'u8[8192]{0}', space=vmem, size = 0x2000, scoped, tag = 'output window, operand 0']
    #allocation3 [shape = 's32[2]{0}', space=sflag, size = 0x8, scoped, tag = 'scoped memory for rotary_positional_embedding.1']
    %8 = vsyncpa [#allocation3], 0
    %s9 = scalar_lea.sflag [#allocation3], 1
    %10 = vsyncpa %s9, 0
    loop: start=0, step=1, limit=4
    $region2: #{rotary_positional_embedding.1} parent=1 // loop_pre_header
      _
    $region3: #{rotary_positional_embedding.1} parent=1 // loop_header
      %s12 = sphi 0, %s16
      %p13 = scmp.ge.s32.totalorder %s12, 4
      %s19 = sphi 0, %s31
      %s20 = sphi 0, %s27
      %s21 = sphi 0, %s19
      %s22 = sphi 0, %s20
      %s23 = sphi 0, %s21
      %s24 = sphi 0, %s22
      %s36 = sphi 0, %s38
      %s39 = sphi 0, %s36
      %s40 = sphi 0, %s39
      %s56 = sphi 0, %s40
      %s62 = sphi 0, %s64
      %s65 = sphi 0, %s62
      %s66 = sphi 0, %s65
      %s82 = sphi 0, %s66
      %s88 = sphi 0, %s90
      %s91 = sphi 0, %s88
      %s92 = sphi 0, %s91
      %s108 = sphi 0, %s92
      %s116 = sphi 0, %s118
      %s119 = sphi 0, %s116
      %s120 = sphi 0, %s119
      %s136 = sphi 0, %s120
    $region4: #{rotary_positional_embedding.1} parent=1 // loop_header_branch
      %15 = sbr.rel (%p13) target = $region8
    $region5: #{rotary_positional_embedding.1} parent=1 // loop_body
      %s17 = ssub.s32 %s12, 1
      %s18 = ssub.s32 %s12, 2
      %s25 = sadd.s32 1, %s20
      %p26 = scmp.ge.s32.totalorder %s25, 2
      %s27 = scalar_select %p26, 0, %s25
      %s28 = sadd.s32 1, %s19
      %s29 = scalar_select %p26, %s28, %s19
      %p30 = scmp.ge.s32.totalorder %s29, 1
      %s31 = scalar_select %p30, 0, %s29
      %s32 = ssub.s32 %s20, %s27
      %s33 = ssub.s32 %s19, %s31
      %s34 = sor.u32 %s32, %s33
      %p35 = scmp.eq.s32.totalorder %s34, 0
      %s37 = sadd.s32 %s36, 1
      %s38 = scalar_select %p35, %s36, %s37
      %p41 = pneg %p35
      %p42 = scmp.eq.s32.totalorder %s12, 1
      %p43 = por %p41, %p42
      %p44 = scmp.ne.s32.totalorder %s36, %s39
      %p45 = scmp.eq.s32.totalorder %s12, 0
      %p46 = por %p44, %p45
      %p47 = scmp.ne.s32.totalorder %s36, %s39
      %p48 = scmp.eq.s32.totalorder %s17, 1
      %p49 = por %p47, %p48
      %p50 = scmp.ne.s32.totalorder %s39, %s40
      %p51 = scmp.eq.s32.totalorder %s17, 0
      %p52 = por %p50, %p51
      %p53 = scmp.ne.s32.totalorder %s39, %s40
      %p54 = scmp.eq.s32.totalorder %s18, 1
      %p55 = por %p53, %p54
      %p57 = scmp.ne.s32.totalorder %s40, %s56
      %p58 = scmp.eq.s32.totalorder %s18, 0
      %p59 = por %p57, %p58
      %s60 = ssub.s32 %s19, %s31
      %p61 = scmp.eq.s32.totalorder %s60, 0
      %s63 = sadd.s32 %s62, 1
      %s64 = scalar_select %p61, %s62, %s63
      %p67 = pneg %p61
      %p68 = scmp.eq.s32.totalorder %s12, 1
      %p69 = por %p67, %p68
      %p70 = scmp.ne.s32.totalorder %s62, %s65
      %p71 = scmp.eq.s32.totalorder %s12, 0
      %p72 = por %p70, %p71
      %p73 = scmp.ne.s32.totalorder %s62, %s65
      %p74 = scmp.eq.s32.totalorder %s17, 1
      %p75 = por %p73, %p74
      %p76 = scmp.ne.s32.totalorder %s65, %s66
      %p77 = scmp.eq.s32.totalorder %s17, 0
      %p78 = por %p76, %p77
      %p79 = scmp.ne.s32.totalorder %s65, %s66
      %p80 = scmp.eq.s32.totalorder %s18, 1
      %p81 = por %p79, %p80
      %p83 = scmp.ne.s32.totalorder %s66, %s82
      %p84 = scmp.eq.s32.totalorder %s18, 0
      %p85 = por %p83, %p84
      %s86 = ssub.s32 %s19, %s31
      %p87 = scmp.eq.s32.totalorder %s86, 0
      %s89 = sadd.s32 %s88, 1
      %s90 = scalar_select %p87, %s88, %s89
      %p93 = pneg %p87
      %p94 = scmp.eq.s32.totalorder %s12, 1
      %p95 = por %p93, %p94
      %p96 = scmp.ne.s32.totalorder %s88, %s91
      %p97 = scmp.eq.s32.totalorder %s12, 0
      %p98 = por %p96, %p97
      %p99 = scmp.ne.s32.totalorder %s88, %s91
      %p100 = scmp.eq.s32.totalorder %s17, 1
      %p101 = por %p99, %p100
      %p102 = scmp.ne.s32.totalorder %s91, %s92
      %p103 = scmp.eq.s32.totalorder %s17, 0
      %p104 = por %p102, %p103
      %p105 = scmp.ne.s32.totalorder %s91, %s92
      %p106 = scmp.eq.s32.totalorder %s18, 1
      %p107 = por %p105, %p106
      %p109 = scmp.ne.s32.totalorder %s92, %s108
      %p110 = scmp.eq.s32.totalorder %s18, 0
      %p111 = por %p109, %p110
      %s112 = ssub.s32 %s20, %s27
      %s113 = ssub.s32 %s19, %s31
      %s114 = sor.u32 %s112, %s113
      %p115 = scmp.eq.s32.totalorder %s114, 0
      %s117 = sadd.s32 %s116, 1
      %s118 = scalar_select %p115, %s116, %s117
      %p121 = pneg %p115
      %p122 = scmp.eq.s32.totalorder %s12, 1
      %p123 = por %p121, %p122
      %p124 = scmp.ne.s32.totalorder %s116, %s119
      %p125 = scmp.eq.s32.totalorder %s12, 0
      %p126 = por %p124, %p125
      %p127 = scmp.ne.s32.totalorder %s116, %s119
      %p128 = scmp.eq.s32.totalorder %s17, 1
      %p129 = por %p127, %p128
      %p130 = scmp.ne.s32.totalorder %s119, %s120
      %p131 = scmp.eq.s32.totalorder %s17, 0
      %p132 = por %p130, %p131
      %p133 = scmp.ne.s32.totalorder %s119, %s120
      %p134 = scmp.eq.s32.totalorder %s18, 1
      %p135 = por %p133, %p134
      %p137 = scmp.ne.s32.totalorder %s120, %s136
      %p138 = scmp.eq.s32.totalorder %s18, 0
      %p139 = por %p137, %p138
      %p140 = scmp.le.s32.totalorder 1, %s12
      %p141 = scmp.lt.s32.totalorder %s12, 3
      %p142 = pnand %p140, %p141
      %p143 = pneg %p142
      // Predicated region
      $region9: #{rotary_positional_embedding.1} parent=5 // pred_check
        _
      $region10: #{rotary_positional_embedding.1} parent=5 // pred_check_branch
        %145 = sbr.rel (%p142) target = $region12
      $region11: #{rotary_positional_embedding.1} parent=5 // pred_region
        %s146 = ssub.s32 %s12, 1
        // Predicated region
        $region13: #{rotary_positional_embedding.1} parent=11 // pred_check
          %p147 = pneg %p78
        $region14: #{rotary_positional_embedding.1} parent=11 // pred_check_branch
          %149 = sbr.rel (%p147) target = $region16
        $region15: #{rotary_positional_embedding.1} parent=11 // pred_region
          %p150 = scmp.lt.s32.totalorder %s21, 0
          %s151 = scalar_select %p150, %s21, 0
          %s152 = smul.addr %s151, 8
          %s153 = scalar_lea.vmem %s1, %s152
        $region16: #{rotary_positional_embedding.1} parent=11 // pred_fallthru
          _
        // Predicated region
        $region17: #{rotary_positional_embedding.1} parent=11 // pred_check
          %p154 = pneg %p104
        $region18: #{rotary_positional_embedding.1} parent=11 // pred_check_branch
          %156 = sbr.rel (%p154) target = $region20
        $region19: #{rotary_positional_embedding.1} parent=11 // pred_region
          %p157 = scmp.lt.s32.totalorder %s21, 0
          %s158 = scalar_select %p157, %s21, 0
          %s159 = smul.addr %s158, 8
          %s160 = scalar_lea.vmem %s2, %s159
        $region20: #{rotary_positional_embedding.1} parent=11 // pred_fallthru
          _
      $region12: #{rotary_positional_embedding.1} parent=5 // pred_fallthru
        _
      %p161 = scmp.lt.s32.totalorder %s12, 2
      // Predicated region
      $region21: #{rotary_positional_embedding.1} parent=5 // pred_check
        %p162 = pneg %p161
      $region22: #{rotary_positional_embedding.1} parent=5 // pred_check_branch
        %164 = sbr.rel (%p162) target = $region24
      $region23: #{rotary_positional_embedding.1} parent=5 // pred_region
        // Predicated region
        $region25: #{rotary_positional_embedding.1} parent=23 // pred_check
          %p165 = pneg %p46
        $region26: #{rotary_positional_embedding.1} parent=23 // pred_check_branch
          %167 = sbr.rel (%p165) target = $region28
        $region27: #{rotary_positional_embedding.1} parent=23 // pred_region
          %p168 = scmp.lt.s32.totalorder %s20, 1
          %s169 = scalar_select %p168, %s20, 1
          %p170 = scmp.lt.s32.totalorder %s19, 0
          %s171 = scalar_select %p170, %s19, 0
          %s172 = sadd.s32 %s171, %s169
          %s173 = smul.addr %s172, 8
          %s174 = scalar_lea.vmem %s0, %s173
        $region28: #{rotary_positional_embedding.1} parent=23 // pred_fallthru
          _
      $region24: #{rotary_positional_embedding.1} parent=5 // pred_fallthru
        _
      %p175 = scmp.le.s32.totalorder 1, %s12
      %p176 = scmp.lt.s32.totalorder %s12, 3
      %p177 = pnand %p175, %p176
      %p178 = pneg %p177
      // Predicated region
      $region29: #{rotary_positional_embedding.1} parent=5 // pred_check
        _
      $region30: #{rotary_positional_embedding.1} parent=5 // pred_check_branch
        %180 = sbr.rel (%p177) target = $region32
      $region31: #{rotary_positional_embedding.1} parent=5 // pred_region
        %s181 = ssub.s32 %s12, 1
        %p182 = scmp.lt.s32.totalorder %s22, 1
        %s183 = scalar_select %p182, %s22, 1
        %p184 = scmp.lt.s32.totalorder %s21, 0
        %s185 = scalar_select %p184, %s21, 0
        %s186 = sadd.s32 %s185, %s183
        %s187 = smul.addr %s186, 8
        %s188 = scalar_lea.vmem %s0, %s187
        %p189 = pneg %p52
        %p190 = pneg %p49
        %p191 = scmp.lt.s32.totalorder %s21, 0
        %s192 = scalar_select %p191, %s21, 0
        %s193 = smul.addr %s192, 8
        %s194 = scalar_lea.vmem %s1, %s193
        %p195 = pneg %p78
        %p196 = pneg %p75
        %p197 = scmp.lt.s32.totalorder %s21, 0
        %s198 = scalar_select %p197, %s21, 0
        %s199 = smul.addr %s198, 8
        %s200 = scalar_lea.vmem %s2, %s199
        %p201 = pneg %p104
        %p202 = pneg %p101
        %p203 = pneg %p132
        %p204 = pneg %p129
        %s205 = sand.u32 %s119, 1
        %s206 = scalar_lea.sflag [#allocation3], %s205
        %s207 = sand.u32 %s119, 1
        %s208 = smul.addr %s207, 8
        %s209 = scalar_lea.vmem [#allocation2], %s208
        %p210 = scmp.lt.s32.totalorder %s22, 1
        %s211 = scalar_select %p210, %s22, 1
        %p212 = scmp.lt.s32.totalorder %s21, 0
        %s213 = scalar_select %p212, %s21, 0
        %s214 = sadd.s32 %s213, %s211
        %s215 = smul.addr %s214, 8
        %s216 = scalar_lea.vmem %s0, %s215
        %p217 = scmp.lt.s32.totalorder %s21, 0
        %s218 = scalar_select %p217, %s21, 0
        %s219 = smul.addr %s218, 8
        %s220 = scalar_lea.vmem %s1, %s219
        %p221 = scmp.lt.s32.totalorder %s21, 0
        %s222 = scalar_select %p221, %s21, 0
        %s223 = smul.addr %s222, 8
        %s224 = scalar_lea.vmem %s2, %s223
        %v225 = vld [vmem:[%s220] sm:$0xff]
        %v226 = vld [vmem:[%s224] sm:$0xff]
        %v227 = vld [vmem:[%s216] sm:$0xff]
        %v228 = vmul.f32 %v227, %v225
        %230 = vrot.lane.b32.xlu0 %v226, 8
        %v231 = vpop.permute.xlu0 %230
        %v233 = vmul.f32 %v227, %v231
        %235 = vrot.lane.b32.xlu0 %v233, 120
        %v236 = vpop.permute.xlu0 %235
        %v238 = vsub.f32 %v228, %v236
        %vm239 = vcmask 64512
        %240 = vst.msk [vmem:[%s209] sm:$0xff] %vm239, %v238
        %242 = vrot.lane.b32.xlu0 %v225, 8
        %v243 = vpop.permute.xlu0 %242
        %v245 = vmul.f32 %v227, %v243
        %v246 = vmul.f32 %v227, %v226
        %248 = vrot.lane.b32.xlu0 %v246, 8
        %v249 = vpop.permute.xlu0 %248
        %v251 = vadd.f32 %v245, %v249
        %vm252 = vcmask 130112
        %253 = vst.msk [vmem:[%s209] sm:$0xff] %vm252, %v251
        %v254 = vld [vmem:[%s216] sm:$0xff]
        %vm255 = vcmask 261248
        %256 = vst.msk [vmem:[%s209] sm:$0xff] %vm255, %v254
        %s257 = sand.u32 %s119, 1
        %s258 = scalar_lea.sflag [#allocation3], %s257
        %s259 = sand.u32 %s119, 1
        %s260 = smul.addr %s259, 8
        %s261 = scalar_lea.vmem [#allocation2], %s260
        // Predicated region
        $region33: #{rotary_positional_embedding.1} parent=31 // pred_check
          %p262 = pneg %p129
        $region34: #{rotary_positional_embedding.1} parent=31 // pred_check_branch
          %264 = sbr.rel (%p262) target = $region36
        $region35: #{rotary_positional_embedding.1} parent=31 // pred_region
          %s266 = ssub.s32 128, 128
          %267 = vsyncadd %s258, %s266
          %s268 = sadd.s32 %s21, %s22
          %s269 = smul.addr %s268, 128
          %s270 = scalar_lea.hbm %s3, %s269
          %s272 = sshll.u32 %s261, 4
          %s273 = int_to_ptr.vmem [resolvable:$true] %s272
          %275 = dma.vmem_to_hbm [thread:$0]  %s273, 128, %s270, %s258
        $region36: #{rotary_positional_embedding.1} parent=31 // pred_fallthru
          _
      $region32: #{rotary_positional_embedding.1} parent=5 // pred_fallthru
        _
      %p276 = scmp.le.s32.totalorder 2, %s12
      // Predicated region
      $region37: #{rotary_positional_embedding.1} parent=5 // pred_check
        %p277 = pneg %p276
      $region38: #{rotary_positional_embedding.1} parent=5 // pred_check_branch
        %279 = sbr.rel (%p277) target = $region40
      $region39: #{rotary_positional_embedding.1} parent=5 // pred_region
        %s280 = ssub.s32 %s12, 2
        // Predicated region
        $region41: #{rotary_positional_embedding.1} parent=39 // pred_check
          %p281 = pneg %p135
        $region42: #{rotary_positional_embedding.1} parent=39 // pred_check_branch
          %283 = sbr.rel (%p281) target = $region44
        $region43: #{rotary_positional_embedding.1} parent=39 // pred_region
          %s284 = sand.u32 %s120, 1
          %s285 = scalar_lea.sflag [#allocation3], %s284
          %s286 = sand.u32 %s120, 1
          %s287 = smul.addr %s286, 8
          %s288 = scalar_lea.vmem [#allocation2], %s287
          %289 = dma.done %s285, 128
        $region44: #{rotary_positional_embedding.1} parent=39 // pred_fallthru
          _
      $region40: #{rotary_positional_embedding.1} parent=5 // pred_fallthru
        _
    $region6: #{rotary_positional_embedding.1} parent=1 // loop_footer
      %s16 = sadd.s32 1, %s12
    $region7: #{rotary_positional_embedding.1} parent=1 // loop_footer_branch
      %11 = sbr.rel target = $region3
    $region8: #{rotary_positional_embedding.1} parent=1 // loop_exit
      _
    %290 = vsyncpa [#allocation3], 1
    %s291 = scalar_lea.sflag [#allocation3], 1
    %292 = vsyncpa %s291, 1

</llo_original>
